<compile_context>
chip_gen: v7x
topology: tpu7x:2x2x1
jax: 0.10.0
libtpu: 0.0.40
codegen_flags: <defaults>
</compile_context>

<pallas_src>
import functools

import jax
import jax.numpy as jnp
from jax.experimental import pallas as pl
from jax.experimental.pallas import tpu as pltpu


def _round_up(x, m):
    return -(-x // m) * m


def _sentiment_cnn_kernel(x_ref, p_ref, o_ref, *,
                          F, K1, K2, L1, L2, RB1, RW2, RWF, RBF, RB2):
    """Whole forward on VMEM-resident tiles.

    x_ref : (TB, L_in)        f32   batch tile, single input channel
    p_ref : (ROWS, 128)       f32   packed parameters (lane-broadcast taps/biases):
              rows [0, K1*F)          : conv1 taps, block j row f = w1[f, j]
              rows [RB1, RB1+F)       : conv1 bias, row f = b1[f]
              rows [RW2, RW2+K2*F)    : conv2 taps, block j row f = w2[f, j]
              rows [RWF, RWF+L2)      : fc.weight.T (L2, OUT) zero-padded to 128 lanes
              row  RBF                : fc.bias zero-padded
              row  RB2                : conv2 bias (scalar, lane-broadcast)
    o_ref : (TB, 128)         f32   lane-dense output tile (wrapper slices to OUT)
    """
    x = x_ref[...]                                   # (TB, L_in)
    P = p_ref[...]                                   # (ROWS, 128)

    # conv1 + ReLU: accumulate K1 taps on the VPU; weights are pre-broadcast rows.
    h1 = x[:, None, 0:L1] * P[0:F, 0:L1][None, :, :]
    for j in range(1, K1):                           # static taps -> VPU FMAs
        h1 = h1 + x[:, None, j:j + L1] * P[j * F:(j + 1) * F, 0:L1][None, :, :]
    h1 = jnp.maximum(h1 + P[RB1:RB1 + F, 0:L1][None, :, :], 0.0)     # (TB, F, L1)

    # conv2 + ReLU: accumulate K2 taps on the VPU, then ONE cross-sublane
    # reduction over the filter axis for the whole batch tile.
    s = h1[:, :, 0:L2] * P[RW2:RW2 + F, 0:L2][None, :, :]
    for j in range(1, K2):
        s = s + h1[:, :, j:j + L2] * P[RW2 + j * F:RW2 + (j + 1) * F, 0:L2][None, :, :]
    h2 = jnp.maximum(jnp.sum(s, axis=1) + P[RB2:RB2 + 1, 0:L2], 0.0)  # (TB, L2)

    # fc: one lane-dense MXU dot for the whole batch tile + bias; single dense store.
    o_ref[...] = (jnp.dot(h2, P[RWF:RWF + L2, :], preferred_element_type=jnp.float32)
                  + P[RBF:RBF + 1, :])


def make_sentiment_cnn_forward(params):
    """Packs parameters ONCE and returns a jitted forward: x (B,1,L_in) -> (B,1,OUT)."""
    w1, b1, w2, b2, wf, bf = params
    F_, K1 = w1.shape
    K2 = w2.shape[1]
    OUT, FC_IN = wf.shape
    OUT_PAD = 128
    assert OUT <= OUT_PAD

    # ---- packed parameter slab (built once at init, not per call) ----
    RB1 = K1 * F_                       # conv1 bias rows
    RW2 = RB1 + F_                      # conv2 tap rows
    RWF = _round_up(RW2 + K2 * F_, 8)   # fc weight rows (sublane-tile aligned)
    RBF = RWF + FC_IN                   # fc bias row
    RB2 = RBF + 1                       # conv2 bias row
    N_ROWS = _round_up(RB2 + 1, 8)

    P = jnp.zeros((N_ROWS, OUT_PAD), jnp.float32)
    P = P.at[0:RB1, :].set(
        jnp.broadcast_to(w1.T.reshape(K1 * F_, 1), (K1 * F_, OUT_PAD)))
    P = P.at[RB1:RB1 + F_, :].set(jnp.broadcast_to(b1[:, None], (F_, OUT_PAD)))
    P = P.at[RW2:RW2 + K2 * F_, :].set(
        jnp.broadcast_to(w2.T.reshape(K2 * F_, 1), (K2 * F_, OUT_PAD)))
    P = P.at[RWF:RWF + FC_IN, 0:OUT].set(wf.T)
    P = P.at[RBF, 0:OUT].set(bf)
    P = P.at[RB2, :].set(jnp.full((OUT_PAD,), b2[0], jnp.float32))
    P = jax.block_until_ready(P)        # materialize the slab now, off the call path

    @jax.jit
    def forward(x):
        B, C, L_in = x.shape
        assert C == 1, "conv1 has in_channels == 1"
        L1 = L_in - K1 + 1
        L2 = L1 - K2 + 1
        assert L2 == FC_IN, "reference fc sizing requires n_filters == k1 + k2 - 2"

        # Pad the batch (sublane) dim to 8 so loads/stores are sublane-dense;
        # block the batch across a parallel grid axis for larger B / v7x megacore.
        B8 = _round_up(B, 8)
        TB = min(B8, 128)
        B_pad = _round_up(B8, TB)

        x2 = x.reshape(B, L_in)
        if B_pad != B:
            x2 = jnp.pad(x2, ((0, B_pad - B), (0, 0)))

        kernel = functools.partial(
            _sentiment_cnn_kernel,
            F=F_, K1=K1, K2=K2, L1=L1, L2=L2,
            RB1=RB1, RW2=RW2, RWF=RWF, RBF=RBF, RB2=RB2)

        flops = 2 * B_pad * (F_ * L1 * K1 + F_ * L2 * K2 + L2 * OUT)
        bytes_accessed = 4 * (B_pad * L_in + N_ROWS * OUT_PAD + B_pad * OUT_PAD)

        out_pad = pl.pallas_call(
            kernel,
            out_shape=jax.ShapeDtypeStruct((B_pad, OUT_PAD), jnp.float32),
            grid=(B_pad // TB,),
            in_specs=[
                pl.BlockSpec((TB, L_in), lambda i: (i, 0)),
                # constant index_map -> param slab stays VMEM-resident across steps
                pl.BlockSpec((N_ROWS, OUT_PAD), lambda i: (0, 0)),
            ],
            out_specs=pl.BlockSpec((TB, OUT_PAD), lambda i: (i, 0)),
            compiler_params=pltpu.CompilerParams(
                dimension_semantics=("parallel",)),
            cost_estimate=pl.CostEstimate(
                flops=flops, transcendentals=0, bytes_accessed=bytes_accessed),
        )(x2, P)

        # NOTE: if the consumer can take the lane/sublane-padded (B_pad, 128) slab,
        # return out_pad directly and drop this slice (one fewer dispatched op).
        return out_pad[:B, :OUT].reshape(B, 1, OUT)

    return forward


def ref_forward(x, params):
    """Pure-JAX reference of the PyTorch forward (use_embedding=False)."""
    w1, b1, w2, b2, wf, bf = params
    B, _, L = x.shape
    F_, K1 = w1.shape
    K2 = w2.shape[1]
    L1 = L - K1 + 1
    L2 = L1 - K2 + 1
    x0 = x[:, 0, :]
    h1 = jnp.stack([x0[:, j:j + L1] for j in range(K1)], axis=-1)      # (B,L1,K1)
    h1 = jnp.einsum('blk,fk->bfl', h1, w1) + b1[None, :, None]
    h1 = jnp.maximum(h1, 0.0)
    h2 = jnp.stack([h1[:, :, j:j + L2] for j in range(K2)], axis=-1)   # (B,F,L2,K2)
    h2 = jnp.einsum('bflk,fk->bl', h2, w2) + b2[0]
    h2 = jnp.maximum(h2, 0.0)                                          # (B,L2)
    out = h2 @ wf.T + bf
    return out[:, None, :]                                             # (B,1,OUT)


if __name__ == "__main__":
    # Module hyper-parameters (small, consistent with the reference fc sizing).
    input_size = 32
    kernel_1_size = 5
    kernel_2_size = 5
    n_filters = kernel_1_size + kernel_2_size - 2   # = 8
    output_size = 4
    batch = 2
    fc_in = input_size - n_filters                  # = 24

    key = jax.random.PRNGKey(0)
    kx, kw1, kb1, kw2, kb2, kwf, kbf = jax.random.split(key, 7)
    x = jax.random.normal(kx, (batch, 1, input_size), dtype=jnp.float32)
    w1 = 0.3 * jax.random.normal(kw1, (n_filters, kernel_1_size), dtype=jnp.float32)
    b1 = 0.1 * jax.random.normal(kb1, (n_filters,), dtype=jnp.float32)
    w2 = 0.3 * jax.random.normal(kw2, (n_filters, kernel_2_size), dtype=jnp.float32)
    b2 = 0.1 * jax.random.normal(kb2, (1,), dtype=jnp.float32)
    wf = 0.3 * jax.random.normal(kwf, (output_size, fc_in), dtype=jnp.float32)
    bf = 0.1 * jax.random.normal(kbf, (output_size,), dtype=jnp.float32)
    params = (w1, b1, w2, b2, wf, bf)

    forward = make_sentiment_cnn_forward(params)    # packs params once (init time)
    out = forward(x)
    out = jax.block_until_ready(out)

    ref = ref_forward(x, params)
    assert out.shape == (batch, 1, output_size), out.shape
    assert jnp.allclose(out, ref, atol=1e-5, rtol=1e-5), (out, ref)
    print("KERNEL_OK")
</pallas_src>

<mosaic_0001>
module attributes {stable_mosaic.version = 11 : i64} {
  func.func @_sentiment_cnn_kernel(%arg0: i32, %arg1: memref<8x32xf32, #tpu.memory_space<vmem>>, %arg2: memref<120x128xf32, #tpu.memory_space<vmem>>, %arg3: memref<8x128xf32, #tpu.memory_space<vmem>>) attributes {dimension_semantics = [#tpu.dimension_semantics<parallel>], iteration_bounds = array<i64: 1>, scalar_prefetch = 0 : i64, scratch_operands = 0 : i64, tpu.core_type = #tpu.core_type<tc>, window_params = [{transform_indices = @transform_0, window_bounds = array<i64: 8, 32>}, {pipeline_mode = #tpu.pipeline_mode<synchronous>, transform_indices = @transform_1, window_bounds = array<i64: 120, 128>}, {transform_indices = @transform_2, window_bounds = array<i64: 8, 128>}]} {
    %c0 = arith.constant 0 : index
    %c0_0 = arith.constant 0 : index
    %0 = vector.load %arg1[%c0, %c0_0] : memref<8x32xf32, #tpu.memory_space<vmem>>, vector<8x32xf32>
    %c0_1 = arith.constant 0 : index
    %c0_2 = arith.constant 0 : index
    %1 = vector.load %arg2[%c0_1, %c0_2] : memref<120x128xf32, #tpu.memory_space<vmem>>, vector<120x128xf32>
    %2 = vector.extract_strided_slice %0 {offsets = [0, 0], sizes = [8, 28], strides = [1, 1]} : vector<8x32xf32> to vector<8x28xf32>
    %3 = vector.shape_cast %2 : vector<8x28xf32> to vector<8x1x28xf32>
    %4 = vector.extract_strided_slice %1 {offsets = [0, 0], sizes = [8, 28], strides = [1, 1]} : vector<120x128xf32> to vector<8x28xf32>
    %5 = vector.shape_cast %4 : vector<8x28xf32> to vector<1x8x28xf32>
    %6 = vector.broadcast %3 : vector<8x1x28xf32> to vector<8x8x28xf32>
    %7 = vector.broadcast %5 : vector<1x8x28xf32> to vector<8x8x28xf32>
    %8 = arith.mulf %6, %7 : vector<8x8x28xf32>
    %9 = vector.extract_strided_slice %0 {offsets = [0, 1], sizes = [8, 28], strides = [1, 1]} : vector<8x32xf32> to vector<8x28xf32>
    %10 = vector.shape_cast %9 : vector<8x28xf32> to vector<8x1x28xf32>
    %11 = vector.extract_strided_slice %1 {offsets = [8, 0], sizes = [8, 28], strides = [1, 1]} : vector<120x128xf32> to vector<8x28xf32>
    %12 = vector.shape_cast %11 : vector<8x28xf32> to vector<1x8x28xf32>
    %13 = vector.broadcast %10 : vector<8x1x28xf32> to vector<8x8x28xf32>
    %14 = vector.broadcast %12 : vector<1x8x28xf32> to vector<8x8x28xf32>
    %15 = arith.mulf %13, %14 : vector<8x8x28xf32>
    %16 = arith.addf %8, %15 : vector<8x8x28xf32>
    %17 = vector.extract_strided_slice %0 {offsets = [0, 2], sizes = [8, 28], strides = [1, 1]} : vector<8x32xf32> to vector<8x28xf32>
    %18 = vector.shape_cast %17 : vector<8x28xf32> to vector<8x1x28xf32>
    %19 = vector.extract_strided_slice %1 {offsets = [16, 0], sizes = [8, 28], strides = [1, 1]} : vector<120x128xf32> to vector<8x28xf32>
    %20 = vector.shape_cast %19 : vector<8x28xf32> to vector<1x8x28xf32>
    %21 = vector.broadcast %18 : vector<8x1x28xf32> to vector<8x8x28xf32>
    %22 = vector.broadcast %20 : vector<1x8x28xf32> to vector<8x8x28xf32>
    %23 = arith.mulf %21, %22 : vector<8x8x28xf32>
    %24 = arith.addf %16, %23 : vector<8x8x28xf32>
    %25 = vector.extract_strided_slice %0 {offsets = [0, 3], sizes = [8, 28], strides = [1, 1]} : vector<8x32xf32> to vector<8x28xf32>
    %26 = vector.shape_cast %25 : vector<8x28xf32> to vector<8x1x28xf32>
    %27 = vector.extract_strided_slice %1 {offsets = [24, 0], sizes = [8, 28], strides = [1, 1]} : vector<120x128xf32> to vector<8x28xf32>
    %28 = vector.shape_cast %27 : vector<8x28xf32> to vector<1x8x28xf32>
    %29 = vector.broadcast %26 : vector<8x1x28xf32> to vector<8x8x28xf32>
    %30 = vector.broadcast %28 : vector<1x8x28xf32> to vector<8x8x28xf32>
    %31 = arith.mulf %29, %30 : vector<8x8x28xf32>
    %32 = arith.addf %24, %31 : vector<8x8x28xf32>
    %33 = vector.extract_strided_slice %0 {offsets = [0, 4], sizes = [8, 28], strides = [1, 1]} : vector<8x32xf32> to vector<8x28xf32>
    %34 = vector.shape_cast %33 : vector<8x28xf32> to vector<8x1x28xf32>
    %35 = vector.extract_strided_slice %1 {offsets = [32, 0], sizes = [8, 28], strides = [1, 1]} : vector<120x128xf32> to vector<8x28xf32>
    %36 = vector.shape_cast %35 : vector<8x28xf32> to vector<1x8x28xf32>
    %37 = vector.broadcast %34 : vector<8x1x28xf32> to vector<8x8x28xf32>
    %38 = vector.broadcast %36 : vector<1x8x28xf32> to vector<8x8x28xf32>
    %39 = arith.mulf %37, %38 : vector<8x8x28xf32>
    %40 = arith.addf %32, %39 : vector<8x8x28xf32>
    %41 = vector.extract_strided_slice %1 {offsets = [40, 0], sizes = [8, 28], strides = [1, 1]} : vector<120x128xf32> to vector<8x28xf32>
    %42 = vector.shape_cast %41 : vector<8x28xf32> to vector<1x8x28xf32>
    %43 = vector.broadcast %42 : vector<1x8x28xf32> to vector<8x8x28xf32>
    %44 = arith.addf %40, %43 : vector<8x8x28xf32>
    %cst = arith.constant 0.000000e+00 : f32
    %45 = vector.broadcast %cst : f32 to vector<8x8x28xf32>
    %46 = arith.maximumf %44, %45 : vector<8x8x28xf32>
    %47 = vector.extract_strided_slice %46 {offsets = [0, 0, 0], sizes = [8, 8, 24], strides = [1, 1, 1]} : vector<8x8x28xf32> to vector<8x8x24xf32>
    %48 = vector.extract_strided_slice %1 {offsets = [48, 0], sizes = [8, 24], strides = [1, 1]} : vector<120x128xf32> to vector<8x24xf32>
    %49 = vector.shape_cast %48 : vector<8x24xf32> to vector<1x8x24xf32>
    %50 = vector.broadcast %49 : vector<1x8x24xf32> to vector<8x8x24xf32>
    %51 = arith.mulf %47, %50 : vector<8x8x24xf32>
    %52 = vector.extract_strided_slice %46 {offsets = [0, 0, 1], sizes = [8, 8, 24], strides = [1, 1, 1]} : vector<8x8x28xf32> to vector<8x8x24xf32>
    %53 = vector.extract_strided_slice %1 {offsets = [56, 0], sizes = [8, 24], strides = [1, 1]} : vector<120x128xf32> to vector<8x24xf32>
    %54 = vector.shape_cast %53 : vector<8x24xf32> to vector<1x8x24xf32>
    %55 = vector.broadcast %54 : vector<1x8x24xf32> to vector<8x8x24xf32>
    %56 = arith.mulf %52, %55 : vector<8x8x24xf32>
    %57 = arith.addf %51, %56 : vector<8x8x24xf32>
    %58 = vector.extract_strided_slice %46 {offsets = [0, 0, 2], sizes = [8, 8, 24], strides = [1, 1, 1]} : vector<8x8x28xf32> to vector<8x8x24xf32>
    %59 = vector.extract_strided_slice %1 {offsets = [64, 0], sizes = [8, 24], strides = [1, 1]} : vector<120x128xf32> to vector<8x24xf32>
    %60 = vector.shape_cast %59 : vector<8x24xf32> to vector<1x8x24xf32>
    %61 = vector.broadcast %60 : vector<1x8x24xf32> to vector<8x8x24xf32>
    %62 = arith.mulf %58, %61 : vector<8x8x24xf32>
    %63 = arith.addf %57, %62 : vector<8x8x24xf32>
    %64 = vector.extract_strided_slice %46 {offsets = [0, 0, 3], sizes = [8, 8, 24], strides = [1, 1, 1]} : vector<8x8x28xf32> to vector<8x8x24xf32>
    %65 = vector.extract_strided_slice %1 {offsets = [72, 0], sizes = [8, 24], strides = [1, 1]} : vector<120x128xf32> to vector<8x24xf32>
    %66 = vector.shape_cast %65 : vector<8x24xf32> to vector<1x8x24xf32>
    %67 = vector.broadcast %66 : vector<1x8x24xf32> to vector<8x8x24xf32>
    %68 = arith.mulf %64, %67 : vector<8x8x24xf32>
    %69 = arith.addf %63, %68 : vector<8x8x24xf32>
    %70 = vector.extract_strided_slice %46 {offsets = [0, 0, 4], sizes = [8, 8, 24], strides = [1, 1, 1]} : vector<8x8x28xf32> to vector<8x8x24xf32>
    %71 = vector.extract_strided_slice %1 {offsets = [80, 0], sizes = [8, 24], strides = [1, 1]} : vector<120x128xf32> to vector<8x24xf32>
    %72 = vector.shape_cast %71 : vector<8x24xf32> to vector<1x8x24xf32>
    %73 = vector.broadcast %72 : vector<1x8x24xf32> to vector<8x8x24xf32>
    %74 = arith.mulf %70, %73 : vector<8x8x24xf32>
    %75 = arith.addf %69, %74 : vector<8x8x24xf32>
    %cst_3 = arith.constant dense<0.000000e+00> : vector<8x24xf32>
    %76 = vector.multi_reduction <add>, %75, %cst_3 [1] : vector<8x8x24xf32> to vector<8x24xf32>
    %77 = vector.extract_strided_slice %1 {offsets = [113, 0], sizes = [1, 24], strides = [1, 1]} : vector<120x128xf32> to vector<1x24xf32>
    %78 = vector.broadcast %77 : vector<1x24xf32> to vector<8x24xf32>
    %79 = arith.addf %76, %78 : vector<8x24xf32>
    %cst_4 = arith.constant 0.000000e+00 : f32
    %80 = vector.broadcast %cst_4 : f32 to vector<8x24xf32>
    %81 = arith.maximumf %79, %80 : vector<8x24xf32>
    %82 = vector.extract_strided_slice %1 {offsets = [88, 0], sizes = [24, 128], strides = [1, 1]} : vector<120x128xf32> to vector<24x128xf32>
    %cst_5 = arith.constant dense<0.000000e+00> : vector<8x128xf32>
    %83 = tpu.matmul %81, %82, %cst_5 {dimension_numbers = #tpu.dot_dimension_numbers<[1], [0], [0], [1], [0, 0, 1, 1], [], []>} : vector<8x24xf32>, vector<24x128xf32>, vector<8x128xf32> -> vector<8x128xf32>
    %84 = vector.extract_strided_slice %1 {offsets = [112, 0], sizes = [1, 128], strides = [1, 1]} : vector<120x128xf32> to vector<1x128xf32>
    %85 = vector.broadcast %84 : vector<1x128xf32> to vector<8x128xf32>
    %86 = arith.addf %83, %85 : vector<8x128xf32>
    %c0_6 = arith.constant 0 : index
    %c0_7 = arith.constant 0 : index
    %87 = vector.load %arg3[%c0_6, %c0_7] : memref<8x128xf32, #tpu.memory_space<vmem>>, vector<8x128xf32>
    tpu.vector_store %arg3[%c0_6, %c0_7], %86 {strides = array<i32>} : memref<8x128xf32, #tpu.memory_space<vmem>>, vector<8x128xf32>,
    return
  }
  func.func @transform_0(%arg0: i32) -> (i32, i32) {
    %c0_i32 = arith.constant 0 : i32
    %c0_i32_0 = arith.constant 0 : i32
    return %arg0, %c0_i32 : i32, i32
  }
  func.func @transform_1(%arg0: i32) -> (i32, i32) {
    %c0_i32 = arith.constant 0 : i32
    %c0_i32_0 = arith.constant 0 : i32
    %c0_i32_1 = arith.constant 0 : i32
    return %c0_i32, %c0_i32_0 : i32, i32
  }
  func.func @transform_2(%arg0: i32) -> (i32, i32) {
    %c0_i32 = arith.constant 0 : i32
    %c0_i32_0 = arith.constant 0 : i32
    return %arg0, %c0_i32 : i32, i32
  }
}

</mosaic_0001>

<llo_original>
// kernel: forward.1
$region0: #{forward.1}
  #allocation0 [shape = 'u32[]', space=smem, size = 0x4, offset = 0x4, fixed_abs, tag = 'smem constant byte address 0x4 - core index']
  #allocation1 [shape = 'u32[144,128]{1,0:T(1,128)}', space=vmem, size = 0x12000, scoped, tag = 'internal scratch']
  %s0 = inlined_call_operand.vmem [shape: f32[8,32], index: 0, kind: input, shape index: {}]
  %s1 = inlined_call_operand.hbm [shape: f32[120,128], index: 1, kind: input, shape index: {}]
  %s2 = inlined_call_operand.vmem [shape: f32[8,128], index: 2, kind: output, shape index: {}]
  %s3 = sld [smem:[#allocation0]]
  $region22: #{forward.1} parent=0
    _
  %s5 = ssub.s32 1, %s3
  %s6 = scalar_select 0, %s5, %s3
  $region1: #{forward.1} parent=0
    #allocation2 [shape = 'u8[61440]{0}', space=vmem, size = 0xf000, scoped, tag = 'input window, operand 1, single buffered']
    #allocation3 [shape = 's32[1]{0}', space=sflag, size = 0x4, scoped, tag = 'scoped memory for forward.1']
    %7 = vsyncpa [#allocation3], 0
    // Predicated region
    $region2: #{forward.1} parent=1 // pred_check
      _
    $region3: #{forward.1} parent=1 // pred_check_branch
      %9 = sbr.rel (0) target = $region5
    $region4: #{forward.1} parent=1 // pred_region
      _
    $region5: #{forward.1} parent=1 // pred_fallthru
      _
    // Predicated region
    $region6: #{forward.1} parent=1 // pred_check
      _
    $region7: #{forward.1} parent=1 // pred_check_branch
      %11 = sbr.rel (0) target = $region9
    $region8: #{forward.1} parent=1 // pred_region
      %s13 = ssub.s32 1920, 1920
      %14 = vsyncadd [#allocation3], %s13
      %s15 = sshll.u32 [#allocation2], 4
      %s16 = int_to_ptr.vmem [resolvable:$true] %s15
      %21 = dma.hbm_to_vmem [thread:$0]  %s1, 1920, %s16, [#allocation3], 128, 128, 8
    $region9: #{forward.1} parent=1 // pred_fallthru
      _
    // Predicated region
    $region10: #{forward.1} parent=1 // pred_check
      _
    $region11: #{forward.1} parent=1 // pred_check_branch
      %23 = sbr.rel (0) target = $region13
    $region12: #{forward.1} parent=1 // pred_region
      %24 = dma.done [#allocation3], 1920
    $region13: #{forward.1} parent=1 // pred_fallthru
      _
    %v25 = vld [vmem:[%s0] sm:$0xff]
    %v26 = vld [vmem:[#allocation2] sm:$0xff]
    %v27 = vld [vmem:[#allocation2 + $0x8] sm:$0xff]
    %v28 = vld [vmem:[#allocation2 + $0x10] sm:$0xff]
    %v29 = vld [vmem:[#allocation2 + $0x18] sm:$0xff]
    %v30 = vld [vmem:[#allocation2 + $0x20] sm:$0xff]
    %v31 = vld [vmem:[#allocation2 + $0x28] sm:$0xff]
    %v32 = vld [vmem:[#allocation2 + $0x30] sm:$0xff]
    %v33 = vld [vmem:[#allocation2 + $0x38] sm:$0xff]
    %v34 = vld [vmem:[#allocation2 + $0x40] sm:$0xff]
    %v35 = vld [vmem:[#allocation2 + $0x48] sm:$0xff]
    %v36 = vld [vmem:[#allocation2 + $0x50] sm:$0xff]
    %v37 = vld [vmem:[#allocation2 + $0x58] sm:$0xff]
    %v38 = vld [vmem:[#allocation2 + $0x60] sm:$0xff]
    %v39 = vld [vmem:[#allocation2 + $0x68] sm:$0xff]
    %v40 = vld [vmem:[#allocation2 + $0x70] sm:$0xff]
    %v42 = vcombine.high %v25, %v25
    %v44 = vunpack.c.l.s4 1966171168
    %v45 = vunpack.c.0.s8 %v44
    %v46 = vlaneseq
    %v47 = vshrl.u32 %v46, 7
    %v48 = vsub.s32 %v45, %v47
    %v49 = vrot.slane %v25, %v48
    %v51 = vunpack.c.l.s4 1966171168
    %v52 = vunpack.c.0.s8 %v51
    %v53 = vlaneseq
    %v54 = vshrl.u32 %v53, 7
    %v55 = vsub.s32 %v52, %v54
    %v56 = vrot.slane %v42, %v55
    %v57 = vcombine.high %v49, %v49
    %v58 = vcombine.high %v56, %v56
    %v60 = vunpack.c.l.s4 1966171168
    %v61 = vunpack.c.0.s8 %v60
    %v62 = vlaneseq
    %v63 = vshrl.u32 %v62, 7
    %v64 = vsub.s32 %v61, %v63
    %v65 = vrot.slane %v49, %v64
    %v67 = vunpack.c.l.s4 1966171168
    %v68 = vunpack.c.0.s8 %v67
    %v69 = vlaneseq
    %v70 = vshrl.u32 %v69, 7
    %v71 = vsub.s32 %v68, %v70
    %v72 = vrot.slane %v56, %v71
    %v74 = vunpack.c.l.s4 1966171168
    %v75 = vunpack.c.0.s8 %v74
    %v76 = vlaneseq
    %v77 = vshrl.u32 %v76, 7
    %v78 = vsub.s32 %v75, %v77
    %v79 = vrot.slane %v57, %v78
    %v81 = vunpack.c.l.s4 1966171168
    %v82 = vunpack.c.0.s8 %v81
    %v83 = vlaneseq
    %v84 = vshrl.u32 %v83, 7
    %v85 = vsub.s32 %v82, %v84
    %v86 = vrot.slane %v58, %v85
    %v87 = vcombine.high %v65, %v65
    %v88 = vcombine.high %v72, %v72
    %v89 = vcombine.high %v79, %v79
    %v90 = vcombine.high %v86, %v86
    %v91 = vlaneseq
    %v92 = vshrl.u32 %v91, 7
    %v93 = vsub.s32 0, %v92
    %v94 = vrot.slane %v65, %v93
    %v95 = vlaneseq
    %v96 = vshrl.u32 %v95, 7
    %v97 = vsub.s32 0, %v96
    %v98 = vrot.slane %v79, %v97
    %v99 = vlaneseq
    %v100 = vshrl.u32 %v99, 7
    %v101 = vsub.s32 0, %v100
    %v102 = vrot.slane %v87, %v101
    %v103 = vlaneseq
    %v104 = vshrl.u32 %v103, 7
    %v105 = vsub.s32 0, %v104
    %v106 = vrot.slane %v89, %v105
    %v107 = vlaneseq
    %v108 = vshrl.u32 %v107, 7
    %v109 = vsub.s32 0, %v108
    %v110 = vrot.slane %v72, %v109
    %v111 = vlaneseq
    %v112 = vshrl.u32 %v111, 7
    %v113 = vsub.s32 0, %v112
    %v114 = vrot.slane %v86, %v113
    %v115 = vlaneseq
    %v116 = vshrl.u32 %v115, 7
    %v117 = vsub.s32 0, %v116
    %v118 = vrot.slane %v88, %v117
    %v119 = vlaneseq
    %v120 = vshrl.u32 %v119, 7
    %v121 = vsub.s32 0, %v120
    %v122 = vrot.slane %v90, %v121
    %v131 = vmul.f32 %v94, %v26
    %v132 = vmul.f32 %v98, %v26
    %v133 = vmul.f32 %v102, %v26
    %v134 = vmul.f32 %v106, %v26
    %v135 = vmul.f32 %v110, %v26
    %v136 = vmul.f32 %v114, %v26
    %v137 = vmul.f32 %v118, %v26
    %v138 = vmul.f32 %v122, %v26
    %140 = vrot.lane.b32.xlu0 %v27, 1
    %v141 = vpop.permute.xlu0 %140
    %v143 = vmul.f32 %v94, %v141
    %v144 = vmul.f32 %v98, %v141
    %v145 = vmul.f32 %v102, %v141
    %v146 = vmul.f32 %v106, %v141
    %v147 = vmul.f32 %v110, %v141
    %v148 = vmul.f32 %v114, %v141
    %v149 = vmul.f32 %v118, %v141
    %v150 = vmul.f32 %v122, %v141
    %159 = vrot.lane.b32.xlu0 %v143, 127
    %v160 = vpop.permute.xlu0 %159
    %161 = vrot.lane.b32.xlu0 %v144, 127
    %v162 = vpop.permute.xlu0 %161
    %163 = vrot.lane.b32.xlu0 %v145, 127
    %v164 = vpop.permute.xlu0 %163
    %165 = vrot.lane.b32.xlu0 %v146, 127
    %v166 = vpop.permute.xlu0 %165
    %167 = vrot.lane.b32.xlu0 %v147, 127
    %v168 = vpop.permute.xlu0 %167
    %169 = vrot.lane.b32.xlu0 %v148, 127
    %v170 = vpop.permute.xlu0 %169
    %171 = vrot.lane.b32.xlu0 %v149, 127
    %v172 = vpop.permute.xlu0 %171
    %173 = vrot.lane.b32.xlu0 %v150, 127
    %v174 = vpop.permute.xlu0 %173
    %v183 = vadd.f32 %v131, %v160
    %v184 = vadd.f32 %v132, %v162
    %v185 = vadd.f32 %v133, %v164
    %v186 = vadd.f32 %v134, %v166
    %v187 = vadd.f32 %v135, %v168
    %v188 = vadd.f32 %v136, %v170
    %v189 = vadd.f32 %v137, %v172
    %v190 = vadd.f32 %v138, %v174
    %192 = vrot.lane.b32.xlu0 %v28, 2
    %v193 = vpop.permute.xlu0 %192
    %v195 = vmul.f32 %v94, %v193
    %v196 = vmul.f32 %v98, %v193
    %v197 = vmul.f32 %v102, %v193
    %v198 = vmul.f32 %v106, %v193
    %v199 = vmul.f32 %v110, %v193
    %v200 = vmul.f32 %v114, %v193
    %v201 = vmul.f32 %v118, %v193
    %v202 = vmul.f32 %v122, %v193
    %211 = vrot.lane.b32.xlu0 %v195, 126
    %v212 = vpop.permute.xlu0 %211
    %213 = vrot.lane.b32.xlu0 %v196, 126
    %v214 = vpop.permute.xlu0 %213
    %215 = vrot.lane.b32.xlu0 %v197, 126
    %v216 = vpop.permute.xlu0 %215
    %217 = vrot.lane.b32.xlu0 %v198, 126
    %v218 = vpop.permute.xlu0 %217
    %219 = vrot.lane.b32.xlu0 %v199, 126
    %v220 = vpop.permute.xlu0 %219
    %221 = vrot.lane.b32.xlu0 %v200, 126
    %v222 = vpop.permute.xlu0 %221
    %223 = vrot.lane.b32.xlu0 %v201, 126
    %v224 = vpop.permute.xlu0 %223
    %225 = vrot.lane.b32.xlu0 %v202, 126
    %v226 = vpop.permute.xlu0 %225
    %v235 = vadd.f32 %v183, %v212
    %v236 = vadd.f32 %v184, %v214
    %v237 = vadd.f32 %v185, %v216
    %v238 = vadd.f32 %v186, %v218
    %v239 = vadd.f32 %v187, %v220
    %v240 = vadd.f32 %v188, %v222
    %v241 = vadd.f32 %v189, %v224
    %v242 = vadd.f32 %v190, %v226
    %244 = vrot.lane.b32.xlu0 %v29, 3
    %v245 = vpop.permute.xlu0 %244
    %v247 = vmul.f32 %v94, %v245
    %v248 = vmul.f32 %v98, %v245
    %v249 = vmul.f32 %v102, %v245
    %v250 = vmul.f32 %v106, %v245
    %v251 = vmul.f32 %v110, %v245
    %v252 = vmul.f32 %v114, %v245
    %v253 = vmul.f32 %v118, %v245
    %v254 = vmul.f32 %v122, %v245
    %263 = vrot.lane.b32.xlu0 %v247, 125
    %v264 = vpop.permute.xlu0 %263
    %265 = vrot.lane.b32.xlu0 %v248, 125
    %v266 = vpop.permute.xlu0 %265
    %267 = vrot.lane.b32.xlu0 %v249, 125
    %v268 = vpop.permute.xlu0 %267
    %269 = vrot.lane.b32.xlu0 %v250, 125
    %v270 = vpop.permute.xlu0 %269
    %271 = vrot.lane.b32.xlu0 %v251, 125
    %v272 = vpop.permute.xlu0 %271
    %273 = vrot.lane.b32.xlu0 %v252, 125
    %v274 = vpop.permute.xlu0 %273
    %275 = vrot.lane.b32.xlu0 %v253, 125
    %v276 = vpop.permute.xlu0 %275
    %277 = vrot.lane.b32.xlu0 %v254, 125
    %v278 = vpop.permute.xlu0 %277
    %v287 = vadd.f32 %v235, %v264
    %v288 = vadd.f32 %v236, %v266
    %v289 = vadd.f32 %v237, %v268
    %v290 = vadd.f32 %v238, %v270
    %v291 = vadd.f32 %v239, %v272
    %v292 = vadd.f32 %v240, %v274
    %v293 = vadd.f32 %v241, %v276
    %v294 = vadd.f32 %v242, %v278
    %296 = vrot.lane.b32.xlu0 %v30, 4
    %v297 = vpop.permute.xlu0 %296
    %v299 = vmul.f32 %v94, %v297
    %v300 = vmul.f32 %v98, %v297
    %v301 = vmul.f32 %v102, %v297
    %v302 = vmul.f32 %v106, %v297
    %v303 = vmul.f32 %v110, %v297
    %v304 = vmul.f32 %v114, %v297
    %v305 = vmul.f32 %v118, %v297
    %v306 = vmul.f32 %v122, %v297
    %315 = vrot.lane.b32.xlu0 %v299, 124
    %v316 = vpop.permute.xlu0 %315
    %317 = vrot.lane.b32.xlu0 %v300, 124
    %v318 = vpop.permute.xlu0 %317
    %319 = vrot.lane.b32.xlu0 %v301, 124
    %v320 = vpop.permute.xlu0 %319
    %321 = vrot.lane.b32.xlu0 %v302, 124
    %v322 = vpop.permute.xlu0 %321
    %323 = vrot.lane.b32.xlu0 %v303, 124
    %v324 = vpop.permute.xlu0 %323
    %325 = vrot.lane.b32.xlu0 %v304, 124
    %v326 = vpop.permute.xlu0 %325
    %327 = vrot.lane.b32.xlu0 %v305, 124
    %v328 = vpop.permute.xlu0 %327
    %329 = vrot.lane.b32.xlu0 %v306, 124
    %v330 = vpop.permute.xlu0 %329
    %v339 = vadd.f32 %v287, %v316
    %v340 = vadd.f32 %v288, %v318
    %v341 = vadd.f32 %v289, %v320
    %v342 = vadd.f32 %v290, %v322
    %v343 = vadd.f32 %v291, %v324
    %v344 = vadd.f32 %v292, %v326
    %v345 = vadd.f32 %v293, %v328
    %v346 = vadd.f32 %v294, %v330
    %v347 = vadd.f32 %v339, %v31
    %v348 = vadd.f32 %v340, %v31
    %v349 = vadd.f32 %v341, %v31
    %v350 = vadd.f32 %v342, %v31
    %v351 = vadd.f32 %v343, %v31
    %v352 = vadd.f32 %v344, %v31
    %v353 = vadd.f32 %v345, %v31
    %v354 = vadd.f32 %v346, %v31
    %v355 = vmax.f32 %v347, 0.0
    %v356 = vmax.f32 %v348, 0.0
    %v357 = vmax.f32 %v349, 0.0
    %v358 = vmax.f32 %v350, 0.0
    %v359 = vmax.f32 %v351, 0.0
    %v360 = vmax.f32 %v352, 0.0
    %v361 = vmax.f32 %v353, 0.0
    %v362 = vmax.f32 %v354, 0.0
    %v363 = vmul.f32 %v355, %v32
    %v364 = vmul.f32 %v356, %v32
    %v365 = vmul.f32 %v357, %v32
    %v366 = vmul.f32 %v358, %v32
    %v367 = vmul.f32 %v359, %v32
    %v368 = vmul.f32 %v360, %v32
    %v369 = vmul.f32 %v361, %v32
    %v370 = vmul.f32 %v362, %v32
    %372 = vrot.lane.b32.xlu0 %v33, 1
    %v373 = vpop.permute.xlu0 %372
    %v375 = vmul.f32 %v355, %v373
    %v376 = vmul.f32 %v356, %v373
    %v377 = vmul.f32 %v357, %v373
    %v378 = vmul.f32 %v358, %v373
    %v379 = vmul.f32 %v359, %v373
    %v380 = vmul.f32 %v360, %v373
    %v381 = vmul.f32 %v361, %v373
    %v382 = vmul.f32 %v362, %v373
    %391 = vrot.lane.b32.xlu0 %v375, 127
    %v392 = vpop.permute.xlu0 %391
    %393 = vrot.lane.b32.xlu0 %v376, 127
    %v394 = vpop.permute.xlu0 %393
    %395 = vrot.lane.b32.xlu0 %v377, 127
    %v396 = vpop.permute.xlu0 %395
    %397 = vrot.lane.b32.xlu0 %v378, 127
    %v398 = vpop.permute.xlu0 %397
    %399 = vrot.lane.b32.xlu0 %v379, 127
    %v400 = vpop.permute.xlu0 %399
    %401 = vrot.lane.b32.xlu0 %v380, 127
    %v402 = vpop.permute.xlu0 %401
    %403 = vrot.lane.b32.xlu0 %v381, 127
    %v404 = vpop.permute.xlu0 %403
    %405 = vrot.lane.b32.xlu0 %v382, 127
    %v406 = vpop.permute.xlu0 %405
    %v415 = vadd.f32 %v363, %v392
    %v416 = vadd.f32 %v364, %v394
    %v417 = vadd.f32 %v365, %v396
    %v418 = vadd.f32 %v366, %v398
    %v419 = vadd.f32 %v367, %v400
    %v420 = vadd.f32 %v368, %v402
    %v421 = vadd.f32 %v369, %v404
    %v422 = vadd.f32 %v370, %v406
    %424 = vrot.lane.b32.xlu0 %v34, 2
    %v425 = vpop.permute.xlu0 %424
    %v427 = vmul.f32 %v355, %v425
    %v428 = vmul.f32 %v356, %v425
    %v429 = vmul.f32 %v357, %v425
    %v430 = vmul.f32 %v358, %v425
    %v431 = vmul.f32 %v359, %v425
    %v432 = vmul.f32 %v360, %v425
    %v433 = vmul.f32 %v361, %v425
    %v434 = vmul.f32 %v362, %v425
    %443 = vrot.lane.b32.xlu0 %v427, 126
    %v444 = vpop.permute.xlu0 %443
    %445 = vrot.lane.b32.xlu0 %v428, 126
    %v446 = vpop.permute.xlu0 %445
    %447 = vrot.lane.b32.xlu0 %v429, 126
    %v448 = vpop.permute.xlu0 %447
    %449 = vrot.lane.b32.xlu0 %v430, 126
    %v450 = vpop.permute.xlu0 %449
    %451 = vrot.lane.b32.xlu0 %v431, 126
    %v452 = vpop.permute.xlu0 %451
    %453 = vrot.lane.b32.xlu0 %v432, 126
    %v454 = vpop.permute.xlu0 %453
    %455 = vrot.lane.b32.xlu0 %v433, 126
    %v456 = vpop.permute.xlu0 %455
    %457 = vrot.lane.b32.xlu0 %v434, 126
    %v458 = vpop.permute.xlu0 %457
    %v467 = vadd.f32 %v415, %v444
    %v468 = vadd.f32 %v416, %v446
    %v469 = vadd.f32 %v417, %v448
    %v470 = vadd.f32 %v418, %v450
    %v471 = vadd.f32 %v419, %v452
    %v472 = vadd.f32 %v420, %v454
    %v473 = vadd.f32 %v421, %v456
    %v474 = vadd.f32 %v422, %v458
    %476 = vrot.lane.b32.xlu0 %v35, 3
    %v477 = vpop.permute.xlu0 %476
    %v479 = vmul.f32 %v355, %v477
    %v480 = vmul.f32 %v356, %v477
    %v481 = vmul.f32 %v357, %v477
    %v482 = vmul.f32 %v358, %v477
    %v483 = vmul.f32 %v359, %v477
    %v484 = vmul.f32 %v360, %v477
    %v485 = vmul.f32 %v361, %v477
    %v486 = vmul.f32 %v362, %v477
    %495 = vrot.lane.b32.xlu0 %v479, 125
    %v496 = vpop.permute.xlu0 %495
    %497 = vrot.lane.b32.xlu0 %v480, 125
    %v498 = vpop.permute.xlu0 %497
    %499 = vrot.lane.b32.xlu0 %v481, 125
    %v500 = vpop.permute.xlu0 %499
    %501 = vrot.lane.b32.xlu0 %v482, 125
    %v502 = vpop.permute.xlu0 %501
    %503 = vrot.lane.b32.xlu0 %v483, 125
    %v504 = vpop.permute.xlu0 %503
    %505 = vrot.lane.b32.xlu0 %v484, 125
    %v506 = vpop.permute.xlu0 %505
    %507 = vrot.lane.b32.xlu0 %v485, 125
    %v508 = vpop.permute.xlu0 %507
    %509 = vrot.lane.b32.xlu0 %v486, 125
    %v510 = vpop.permute.xlu0 %509
    %v519 = vadd.f32 %v467, %v496
    %v520 = vadd.f32 %v468, %v498
    %v521 = vadd.f32 %v469, %v500
    %v522 = vadd.f32 %v470, %v502
    %v523 = vadd.f32 %v471, %v504
    %v524 = vadd.f32 %v472, %v506
    %v525 = vadd.f32 %v473, %v508
    %v526 = vadd.f32 %v474, %v510
    %528 = vrot.lane.b32.xlu0 %v36, 4
    %v529 = vpop.permute.xlu0 %528
    %v531 = vmul.f32 %v355, %v529
    %v532 = vmul.f32 %v356, %v529
    %v533 = vmul.f32 %v357, %v529
    %v534 = vmul.f32 %v358, %v529
    %v535 = vmul.f32 %v359, %v529
    %v536 = vmul.f32 %v360, %v529
    %v537 = vmul.f32 %v361, %v529
    %v538 = vmul.f32 %v362, %v529
    %547 = vrot.lane.b32.xlu0 %v531, 124
    %v548 = vpop.permute.xlu0 %547
    %549 = vrot.lane.b32.xlu0 %v532, 124
    %v550 = vpop.permute.xlu0 %549
    %551 = vrot.lane.b32.xlu0 %v533, 124
    %v552 = vpop.permute.xlu0 %551
    %553 = vrot.lane.b32.xlu0 %v534, 124
    %v554 = vpop.permute.xlu0 %553
    %555 = vrot.lane.b32.xlu0 %v535, 124
    %v556 = vpop.permute.xlu0 %555
    %557 = vrot.lane.b32.xlu0 %v536, 124
    %v558 = vpop.permute.xlu0 %557
    %559 = vrot.lane.b32.xlu0 %v537, 124
    %v560 = vpop.permute.xlu0 %559
    %561 = vrot.lane.b32.xlu0 %v538, 124
    %v562 = vpop.permute.xlu0 %561
    %v571 = vadd.f32 %v519, %v548
    %v572 = vadd.f32 %v520, %v550
    %v573 = vadd.f32 %v521, %v552
    %v574 = vadd.f32 %v522, %v554
    %v575 = vadd.f32 %v523, %v556
    %v576 = vadd.f32 %v524, %v558
    %v577 = vadd.f32 %v525, %v560
    %v578 = vadd.f32 %v526, %v562
    %vm579 = vcmask 195584
    %v580 = vsel %vm579, %v571, 0.0
    %v581 = vrot.slane %v580, 4
    %v582 = vadd.f32 %v580, %v581
    %v583 = vrot.slane %v582, 2
    %v584 = vadd.f32 %v582, %v583
    %v585 = vrot.slane %v584, 1
    %v586 = vadd.f32 %v584, %v585
    %v587 = vsel %vm579, %v572, 0.0
    %v588 = vrot.slane %v587, 4
    %v589 = vadd.f32 %v587, %v588
    %v590 = vrot.slane %v589, 2
    %v591 = vadd.f32 %v589, %v590
    %v592 = vrot.slane %v591, 1
    %v593 = vadd.f32 %v591, %v592
    %v594 = vsel %vm579, %v573, 0.0
    %v595 = vrot.slane %v594, 4
    %v596 = vadd.f32 %v594, %v595
    %v597 = vrot.slane %v596, 2
    %v598 = vadd.f32 %v596, %v597
    %v599 = vrot.slane %v598, 1
    %v600 = vadd.f32 %v598, %v599
    %v601 = vsel %vm579, %v574, 0.0
    %v602 = vrot.slane %v601, 4
    %v603 = vadd.f32 %v601, %v602
    %v604 = vrot.slane %v603, 2
    %v605 = vadd.f32 %v603, %v604
    %v606 = vrot.slane %v605, 1
    %v607 = vadd.f32 %v605, %v606
    %v608 = vsel %vm579, %v575, 0.0
    %v609 = vrot.slane %v608, 4
    %v610 = vadd.f32 %v608, %v609
    %v611 = vrot.slane %v610, 2
    %v612 = vadd.f32 %v610, %v611
    %v613 = vrot.slane %v612, 1
    %v614 = vadd.f32 %v612, %v613
    %v615 = vsel %vm579, %v576, 0.0
    %v616 = vrot.slane %v615, 4
    %v617 = vadd.f32 %v615, %v616
    %v618 = vrot.slane %v617, 2
    %v619 = vadd.f32 %v617, %v618
    %v620 = vrot.slane %v619, 1
    %v621 = vadd.f32 %v619, %v620
    %v622 = vsel %vm579, %v577, 0.0
    %v623 = vrot.slane %v622, 4
    %v624 = vadd.f32 %v622, %v623
    %v625 = vrot.slane %v624, 2
    %v626 = vadd.f32 %v624, %v625
    %v627 = vrot.slane %v626, 1
    %v628 = vadd.f32 %v626, %v627
    %v629 = vsel %vm579, %v578, 0.0
    %v630 = vrot.slane %v629, 4
    %v631 = vadd.f32 %v629, %v630
    %v632 = vrot.slane %v631, 2
    %v633 = vadd.f32 %v631, %v632
    %v634 = vrot.slane %v633, 1
    %v635 = vadd.f32 %v633, %v634
    %v636 = vlaneseq
    %v637 = vshrl.u32 %v636, 7
    %v638 = vsub.s32 1, %v637
    %v639 = vrot.slane %v40, %v638
    %v640 = vadd.f32 %v586, %v639
    %v641 = vadd.f32 %v593, %v639
    %v642 = vadd.f32 %v600, %v639
    %v643 = vadd.f32 %v607, %v639
    %v644 = vadd.f32 %v614, %v639
    %v645 = vadd.f32 %v621, %v639
    %v646 = vadd.f32 %v628, %v639
    %v647 = vadd.f32 %v635, %v639
    %v648 = vmax.f32 %v640, 0.0
    %v649 = vmax.f32 %v641, 0.0
    %v650 = vmax.f32 %v642, 0.0
    %v651 = vmax.f32 %v643, 0.0
    %v652 = vmax.f32 %v644, 0.0
    %v653 = vmax.f32 %v645, 0.0
    %v654 = vmax.f32 %v646, 0.0
    %v655 = vmax.f32 %v647, 0.0
    %v656 = vlaneseq
    %v657 = vshrl.u32 %v656, 7
    %v658 = vsub.s32 0, %v657
    %v659 = vrot.slane %v40, %v658
    %v668 = vrot.slane %v649, 7
    %vm669 = vcmask 1041409
    %v670 = vsel %vm669, %v668, %v648
    %v671 = vrot.slane %v650, 6
    %vm672 = vcmask 1042434
    %v673 = vsel %vm672, %v671, %v670
    %v674 = vrot.slane %v651, 5
    %vm675 = vcmask 1043459
    %v676 = vsel %vm675, %v674, %v673
    %v677 = vrot.slane %v652, 4
    %vm678 = vcmask 1044484
    %v679 = vsel %vm678, %v677, %v676
    %v680 = vrot.slane %v653, 3
    %vm681 = vcmask 1045509
    %v682 = vsel %vm681, %v680, %v679
    %v683 = vrot.slane %v654, 2
    %vm684 = vcmask 1046534
    %v685 = vsel %vm684, %v683, %v682
    %v686 = vrot.slane %v655, 1
    %vm687 = vcmask 1047559
    %v688 = vsel %vm687, %v686, %v685
    %v689 = vsel %vm579, %v688, 0
    %691 = vmatprep.subr.mxu0 0.0
    %692 = vmatpush1.msra.mxu0 %v37
    %693 = vmatprep.subr.mxu0 0.0
    %694 = vmatpush1.msra.mxu0 %v38
    %695 = vmatprep.subr.mxu0 0.0
    %696 = vmatpush1.msra.mxu0 %v39
    %697 = vmatprep.subr.mxu0 0.0
    %698 = vmatpush1.msra.mxu0 0.0
    %699 = vmatprep.subr.mxu0 0.0
    %700 = vmatpush1.msra.mxu0 0.0
    %701 = vmatprep.subr.mxu0 0.0
    %702 = vmatpush1.msra.mxu0 0.0
    %703 = vmatprep.subr.mxu0 0.0
    %704 = vmatpush1.msra.mxu0 0.0
    %705 = vmatprep.subr.mxu0 0.0
    %706 = vmatpush1.msra.mxu0 0.0
    %707 = vmatprep.subr.mxu0 0.0
    %708 = vmatpush1.msra.mxu0 0.0
    %709 = vmatprep.subr.mxu0 0.0
    %710 = vmatpush1.msra.mxu0 0.0
    %711 = vmatprep.subr.mxu0 0.0
    %712 = vmatpush1.msra.mxu0 0.0
    %713 = vmatprep.subr.mxu0 0.0
    %714 = vmatpush1.msra.mxu0 0.0
    %715 = vmatprep.subr.mxu0 0.0
    %716 = vmatpush1.msra.mxu0 0.0
    %717 = vmatprep.subr.mxu0 0.0
    %718 = vmatpush1.msra.mxu0 0.0
    %719 = vmatprep.subr.mxu0 0.0
    %720 = vmatpush1.msra.mxu0 0.0
    %721 = vmatprep.subr.mxu0 0.0
    %722 = vmatpush1.msra.mxu0 0.0
    %723 = vmatprep.subr.mxu0 0.0
    %724 = vmatpush1.msra.mxu0 0.0
    %725 = vmatprep.subr.mxu0 0.0
    %726 = vmatpush1.msra.mxu0 0.0
    %727 = vmatprep.subr.mxu0 0.0
    %728 = vmatpush1.msra.mxu0 0.0
    %729 = vmatprep.subr.mxu0 0.0
    %730 = vmatpush1.msra.mxu0 0.0
    %731 = vmatprep.subr.mxu0 0.0
    %732 = vmatpush1.msra.mxu0 0.0
    %733 = vmatprep.subr.mxu0 0.0
    %734 = vmatpush1.msra.mxu0 0.0
    %735 = vmatprep.subr.mxu0 0.0
    %736 = vmatpush1.msra.mxu0 0.0
    %737 = vmatprep.subr.mxu0 0.0
    %738 = vmatpush1.msra.mxu0 0.0
    %739 = vmatprep.subr.mxu0 0.0
    %740 = vmatpush1.msra.mxu0 0.0
    %741 = vmatprep.subr.mxu0 0.0
    %742 = vmatpush1.msra.mxu0 0.0
    %743 = vmatprep.subr.mxu0 0.0
    %744 = vmatpush1.msra.mxu0 0.0
    %745 = vmatprep.subr.mxu0 0.0
    %746 = vmatpush1.msra.mxu0 0.0
    %747 = vmatprep.subr.mxu0 0.0
    %748 = vmatpush1.msra.mxu0 0.0
    %749 = vmatprep.subr.mxu0 0.0
    %750 = vmatpush1.msra.mxu0 0.0
    %751 = vmatprep.subr.mxu0 0.0
    %752 = vmatpush1.msra.mxu0 0.0
    %753 = vmatprep.subr.mxu0 0.0
    %754 = vmatpush1.msra.mxu0 0.0
    %755 = vmatprep.mubr.f32.mxu0 0.0
    %756 = vmatmul.mubr.f32.gmra.mrb[0].mxu0 %v689
    %v757 = vpop.f32.mrb[0].mxu0
    %v758 = vadd.f32 %v659, %v757
    %v759 = vpop.f32.mrb[0].mxu0
    %760 = vdwg.mxu0
    %761 = vst [vmem:[%s2] sm:$0xff] %v758
    // Predicated region
    $region14: #{forward.1} parent=1 // pred_check
      _
    $region15: #{forward.1} parent=1 // pred_check_branch
      %763 = sbr.rel (0) target = $region17
    $region16: #{forward.1} parent=1 // pred_region
      _
    $region17: #{forward.1} parent=1 // pred_fallthru
      _
    // Predicated region
    $region18: #{forward.1} parent=1 // pred_check
      _
    $region19: #{forward.1} parent=1 // pred_check_branch
      %765 = sbr.rel (0) target = $region21
    $region20: #{forward.1} parent=1 // pred_region
      _
    $region21: #{forward.1} parent=1 // pred_fallthru
      _
    %766 = vsyncpa [#allocation3], 1

</llo_original>
